<compile_context>
chip_gen: v7x
topology: tpu7x:2x2x1
jax: 0.10.0
libtpu: 0.0.40
codegen_flags: <defaults>
</compile_context>

<pallas_src>
import functools
import math

import numpy as np
import jax
import jax.numpy as jnp
from jax import lax
from jax.experimental import pallas as pl
from jax.experimental.pallas import tpu as pltpu

N_JOINTS = 16    # LIP pose keypoints
N_CLASSES = 20   # LIP parsing classes


def _round_up(x, m):
    return (x + m - 1) // m * m


def _vmem_limit(block_bytes):
    # Explicit scoped-VMEM budget: roomy enough for large tiles on v5e/v6e,
    # still comfortably inside v7x's 64 MiB physical VMEM.
    return int(min(48 << 20, max(32 << 20, 4 * block_bytes)))


# ---------------------------------------------------------------------------
# Pallas kernels
# ---------------------------------------------------------------------------

def _pool_kernel(x_ref, awt_ref, ah_ref, scale_ref, o_ref, *, planes, use_bf16):
    """Renorm + AvgPool2d(3,2,1,count_include_pad=False) over `planes` planes.

    x_ref     : (planes*H, W)   planes stacked along sublanes, W on lanes
    awt_ref   : (W, Wo)         exact 0/1 1-D pooling matrix (transposed)
    ah_ref    : (Ho, H)         exact 0/1 1-D pooling matrix
    scale_ref : (Ho, Wo)        f32 plane  0.5 / (count_h * count_w)
    o_ref     : (planes, Ho, Wo)
    """
    h = ah_ref.shape[1]
    xv = x_ref[...]
    if use_bf16:
        xv = xv.astype(jnp.bfloat16)
    # Single large MXU matmul for the W-contraction of every plane in the block.
    t = jnp.dot(xv, awt_ref[...], preferred_element_type=jnp.float32)   # (planes*H, Wo)
    if use_bf16:
        t = t.astype(jnp.bfloat16)
    ah = ah_ref[...]
    scale = scale_ref[...]
    for p in range(planes):  # small static unroll (planes <= 8)
        acc = jnp.dot(ah, t[p * h:(p + 1) * h],
                      preferred_element_type=jnp.float32)               # (Ho, Wo)
        o_ref[p] = (acc * scale).astype(o_ref.dtype)


def _heads_kernel(x_ref, w_ref, b_ref, pose_ref, seg_ref, *, use_bf16):
    """Packed pose+seg 1x1-conv heads on one lane-dense spatial tile.

    x_ref : (C, tm)   channels x flattened-spatial tile of one image
    w_ref : (36, C)   packed [pose; seg] weights
    b_ref : (36, 1)
    """
    xv = x_ref[...]
    w = w_ref[...]
    if use_bf16:
        xv = xv.astype(jnp.bfloat16)
        w = w.astype(jnp.bfloat16)
    y = jnp.dot(w, xv, preferred_element_type=jnp.float32) + b_ref[...]  # (36, tm)
    pose_ref[...] = y[:N_JOINTS]
    seg_ref[...] = y[N_JOINTS:]


# ---------------------------------------------------------------------------
# Tiling helpers
# ---------------------------------------------------------------------------

def _pool_matrices(size):
    """1-D pooling matrix (out, size) for kernel=3, stride=2, pad=1 and the
    per-output valid-element counts (count_include_pad=False factorizes)."""
    out = (size + 2 - 3) // 2 + 1
    a = np.zeros((out, size), np.float32)
    for i in range(out):
        for d in (-1, 0, 1):
            j = 2 * i + d
            if 0 <= j < size:
                a[i, j] = 1.0
    return a, a.sum(axis=1)


def _choose_plane_batch(num_planes, h, w, ho, wo, budget_bytes):
    """Planes per grid step: keep (bp*H) sublane-aligned, blocks inside the VMEM
    budget, unroll <= 8, and (when possible) >= 2 grid steps so both TensorCores
    of dual-core chips (v7x) get work."""
    r = 8 // math.gcd(h, 8)                       # bp multiple of r => (bp*h) % 8 == 0
    per_plane = (h * w + ho * wo) * 4 * 2         # double-buffered in + out
    cap = max(1, min(8, budget_bytes // per_plane))
    cap = max(r, cap - cap % r)
    if num_planes >= 2 * r:
        half = (num_planes // 2) - ((num_planes // 2) % r)
        cap = min(cap, max(r, half))
    for bp in range(cap, 0, -1):                  # prefer a divisor (no padding)
        if bp % r == 0 and num_planes % bp == 0:
            return bp, num_planes
    return cap, _round_up(num_planes, cap)


def _choose_lane_tile(m1, target, cap=16384):
    """Spatial tile per image: a large multiple of 128 dividing m1 when possible,
    else a single full-extent tile (tiny inputs), else pad m1 up to a tile
    multiple (rare fallback; never degenerates to tm=128)."""
    if m1 % 128 != 0:
        if m1 <= cap:
            return m1, m1
        tm = min(target, cap)
        return tm, _round_up(m1, tm)
    q = m1 // 128
    cands = [128 * d for d in range(1, q + 1) if q % d == 0 and 128 * d <= cap]
    geq = [t for t in cands if t >= target]
    if geq:
        return min(geq), m1
    if cands and (cands[-1] == m1 or cands[-1] >= 1024):
        return cands[-1], m1
    tm = min(target, cap)
    return tm, _round_up(m1, tm)


# ---------------------------------------------------------------------------
# Wrappers
# ---------------------------------------------------------------------------

def norm_and_downsample(x, *, plane_budget_bytes=8 << 20, use_bf16=False):
    """Fused renormalization + AvgPool2d(3,2,pad=1,count_include_pad=False).

    Returns pooled activations in NCHW (f32, or bf16 when use_bf16)."""
    n, c, h, w = x.shape
    a_h, cnt_h = _pool_matrices(h)
    a_w, cnt_w = _pool_matrices(w)
    ho, wo = a_h.shape[0], a_w.shape[0]

    mat_dtype = jnp.bfloat16 if use_bf16 else jnp.float32
    ah = jnp.asarray(a_h, dtype=mat_dtype)             # (Ho, H), exact 0/1
    awt = jnp.asarray(a_w.T, dtype=mat_dtype)          # (W, Wo), exact 0/1
    # 0.5 input normalization + per-cell valid-count division, rank-1, kept f32.
    scale = jnp.asarray(0.5 / np.outer(cnt_h, cnt_w), dtype=jnp.float32)  # (Ho, Wo)

    num_planes = n * c
    bp, planes_pad = _choose_plane_batch(num_planes, h, w, ho, wo, plane_budget_bytes)
    xf = x.reshape(num_planes, h, w)                   # free collapse
    if planes_pad != num_planes:
        xf = jnp.pad(xf, ((0, planes_pad - num_planes), (0, 0), (0, 0)))
    xf = xf.reshape(planes_pad * h, w)                 # free collapse, W stays on lanes

    out_dtype = jnp.bfloat16 if use_bf16 else jnp.float32
    block_bytes = 4 * (bp * h * w + w * wo + ho * h + ho * wo + bp * ho * wo)
    out = pl.pallas_call(
        functools.partial(_pool_kernel, planes=bp, use_bf16=use_bf16),
        out_shape=jax.ShapeDtypeStruct((planes_pad, ho, wo), out_dtype),
        grid=(planes_pad // bp,),
        in_specs=[
            pl.BlockSpec((bp * h, w), lambda i: (i, 0)),
            pl.BlockSpec((w, wo), lambda i: (0, 0)),
            pl.BlockSpec((ho, h), lambda i: (0, 0)),
            pl.BlockSpec((ho, wo), lambda i: (0, 0)),
        ],
        out_specs=pl.BlockSpec((bp, ho, wo), lambda i: (i, 0, 0)),
        compiler_params=pltpu.CompilerParams(
            dimension_semantics=("parallel",),
            vmem_limit_bytes=_vmem_limit(block_bytes)),
    )(xf, awt, ah, scale)

    if planes_pad != num_planes:
        out = out[:num_planes]
    return out.reshape(n, c, ho, wo)


def run_heads(z, wp, bp_, ws, bs, *, input_scale=1.0, tm_target=4096, use_bf16=False):
    """Packed pose+seg 1x1-conv heads.

    z : (N, C, M)  channels-interior, spatial flattened on the lane axis.
    Returns pose (N, 16, M), seg (N, 20, M), both f32."""
    n, c, m1 = z.shape
    k_all = N_JOINTS + N_CLASSES
    # Pack both heads into one matmul; fold any pending input scaling
    # (normalize-only path) into the tiny weights instead of touching x.
    w_all = (jnp.concatenate([wp.T, ws.T], axis=0) * input_scale).astype(jnp.float32)
    b_all = jnp.concatenate([bp_.reshape(-1), bs.reshape(-1)]).astype(jnp.float32)[:, None]

    tm, m_pad = _choose_lane_tile(m1, tm_target)
    if m_pad != m1:
        z = jnp.pad(z, ((0, 0), (0, 0), (0, m_pad - m1)))

    block_bytes = 4 * (c * tm + k_all * c + k_all + (N_JOINTS + N_CLASSES) * tm)
    pose, seg = pl.pallas_call(
        functools.partial(_heads_kernel, use_bf16=use_bf16),
        out_shape=(jax.ShapeDtypeStruct((n, N_JOINTS, m_pad), jnp.float32),
                   jax.ShapeDtypeStruct((n, N_CLASSES, m_pad), jnp.float32)),
        grid=(n, m_pad // tm),
        in_specs=[
            pl.BlockSpec((None, c, tm), lambda ni, mi: (ni, 0, mi)),
            pl.BlockSpec((k_all, c), lambda ni, mi: (0, 0)),
            pl.BlockSpec((k_all, 1), lambda ni, mi: (0, 0)),
        ],
        out_specs=(pl.BlockSpec((None, N_JOINTS, tm), lambda ni, mi: (ni, 0, mi)),
                   pl.BlockSpec((None, N_CLASSES, tm), lambda ni, mi: (ni, 0, mi))),
        compiler_params=pltpu.CompilerParams(
            dimension_semantics=("parallel", "parallel"),
            vmem_limit_bytes=_vmem_limit(block_bytes)),
    )(z, w_all, b_all)

    if m_pad != m1:
        pose = pose[:, :, :m1]
        seg = seg[:, :, :m1]
    return pose, seg


def mula_net_forward(x, wp, bp_, ws, bs, *, use_bf16=False,
                     plane_budget_bytes=8 << 20, tm_target=4096):
    """Mirrors Mula_Net.forward: renormalize, (conditionally) downsample, run the
    network, return the last-stack pose/seg predictions (NCHW)."""
    n, c, h, w = x.shape
    if w != 256:
        pooled = norm_and_downsample(x, plane_budget_bytes=plane_budget_bytes,
                                     use_bf16=use_bf16)
        _, _, oh, ow = pooled.shape
        z = pooled.reshape(n, c, oh * ow)          # free collapse
        input_scale = 1.0                          # normalization already applied
    else:
        # Normalize-only path: keep NCHW end-to-end; (x+1)/2 - 0.5 == 0.5*x is
        # folded into the (linear) head weights instead of an extra HBM pass.
        # TODO(synk): revisit once the real (non-linear) hourglass backbone exists.
        z = x.reshape(n, c, h * w)                 # free collapse
        oh, ow = h, w
        input_scale = 0.5
    # TODO(synk): full MuLA_HG_MSRAInit backbone unavailable; stand-in 1x1 heads.
    pose, seg = run_heads(z, wp, bp_, ws, bs, input_scale=input_scale,
                          tm_target=tm_target, use_bf16=use_bf16)
    pose = pose.reshape(n, N_JOINTS, oh, ow)       # free collapse
    seg = seg.reshape(n, N_CLASSES, oh, ow)
    return pose, seg


# ---------------------------------------------------------------------------
# Demo / correctness check
# ---------------------------------------------------------------------------

if __name__ == "__main__":
    key = jax.random.PRNGKey(0)
    kx, kp, kbp, ks, kbs, kx2 = jax.random.split(key, 6)
    N, C, H, W = 2, 3, 16, 16
    x = jax.random.uniform(kx, (N, C, H, W), jnp.float32, minval=-1.0, maxval=1.0)
    wp = 0.1 * jax.random.normal(kp, (C, N_JOINTS), jnp.float32)
    bp_ = 0.01 * jax.random.normal(kbp, (1, N_JOINTS), jnp.float32)
    ws = 0.1 * jax.random.normal(ks, (C, N_CLASSES), jnp.float32)
    bs = 0.01 * jax.random.normal(kbs, (1, N_CLASSES), jnp.float32)

    def reference(xin):
        xn = ((xin + 1.0) / 2.0 - 0.5) / 1.0
        if xin.shape[-1] != 256:
            pad = ((0, 0), (0, 0), (1, 1), (1, 1))
            ssum = lax.reduce_window(xn, 0.0, lax.add, (1, 1, 3, 3), (1, 1, 2, 2), pad)
            cnt = lax.reduce_window(jnp.ones_like(xn), 0.0, lax.add,
                                    (1, 1, 3, 3), (1, 1, 2, 2), pad)
            xn = ssum / cnt
        pose = jnp.einsum('nchw,ck->nkhw', xn, wp) + bp_[0][None, :, None, None]
        seg = jnp.einsum('nchw,ck->nkhw', xn, ws) + bs[0][None, :, None, None]
        return pose, seg

    # 1) Downsample path (W != 256): fused renorm+pool kernel, then heads.
    pred_pose, pred_seg = mula_net_forward(x, wp, bp_, ws, bs)
    jax.block_until_ready((pred_pose, pred_seg))
    pose_ref, seg_ref = reference(x)
    np.testing.assert_allclose(np.asarray(pred_pose), np.asarray(pose_ref),
                               rtol=1e-4, atol=1e-4)
    np.testing.assert_allclose(np.asarray(pred_seg), np.asarray(seg_ref),
                               rtol=1e-4, atol=1e-4)

    # 2) Normalize-only path (W == 256): heads kernel directly on NCHW input.
    x2 = jax.random.uniform(kx2, (1, C, 8, 256), jnp.float32, minval=-1.0, maxval=1.0)
    pose2, seg2 = mula_net_forward(x2, wp, bp_, ws, bs)
    jax.block_until_ready((pose2, seg2))
    pose2_ref, seg2_ref = reference(x2)
    np.testing.assert_allclose(np.asarray(pose2), np.asarray(pose2_ref),
                               rtol=1e-4, atol=1e-4)
    np.testing.assert_allclose(np.asarray(seg2), np.asarray(seg2_ref),
                               rtol=1e-4, atol=1e-4)

    print("KERNEL_OK")
</pallas_src>

<mosaic_0001>
module attributes {stable_mosaic.version = 11 : i64} {
  func.func @_pool_kernel(%arg0: i32, %arg1: memref<48x16xf32, #tpu.memory_space<vmem>>, %arg2: memref<16x8xf32, #tpu.memory_space<vmem>>, %arg3: memref<8x16xf32, #tpu.memory_space<vmem>>, %arg4: memref<8x8xf32, #tpu.memory_space<vmem>>, %arg5: memref<3x8x8xf32, #tpu.memory_space<vmem>>) attributes {dimension_semantics = [#tpu.dimension_semantics<parallel>], iteration_bounds = array<i64: 2>, scalar_prefetch = 0 : i64, scratch_operands = 0 : i64, tpu.core_type = #tpu.core_type<tc>, window_params = [{transform_indices = @transform_0, window_bounds = array<i64: 48, 16>}, {pipeline_mode = #tpu.pipeline_mode<synchronous>, transform_indices = @transform_1, window_bounds = array<i64: 16, 8>}, {pipeline_mode = #tpu.pipeline_mode<synchronous>, transform_indices = @transform_2, window_bounds = array<i64: 8, 16>}, {pipeline_mode = #tpu.pipeline_mode<synchronous>, transform_indices = @transform_3, window_bounds = array<i64: 8, 8>}, {transform_indices = @transform_4, window_bounds = array<i64: 3, 8, 8>}]} {
    %c0 = arith.constant 0 : index
    %c0_0 = arith.constant 0 : index
    %0 = vector.load %arg1[%c0, %c0_0] : memref<48x16xf32, #tpu.memory_space<vmem>>, vector<48x16xf32>
    %c0_1 = arith.constant 0 : index
    %c0_2 = arith.constant 0 : index
    %1 = vector.load %arg2[%c0_1, %c0_2] : memref<16x8xf32, #tpu.memory_space<vmem>>, vector<16x8xf32>
    %cst = arith.constant dense<0.000000e+00> : vector<48x8xf32>
    %2 = tpu.matmul %0, %1, %cst {dimension_numbers = #tpu.dot_dimension_numbers<[1], [0], [0], [1], [0, 0, 1, 1], [], []>} : vector<48x16xf32>, vector<16x8xf32>, vector<48x8xf32> -> vector<48x8xf32>
    %c0_3 = arith.constant 0 : index
    %c0_4 = arith.constant 0 : index
    %3 = vector.load %arg3[%c0_3, %c0_4] : memref<8x16xf32, #tpu.memory_space<vmem>>, vector<8x16xf32>
    %c0_5 = arith.constant 0 : index
    %c0_6 = arith.constant 0 : index
    %4 = vector.load %arg4[%c0_5, %c0_6] : memref<8x8xf32, #tpu.memory_space<vmem>>, vector<8x8xf32>
    %5 = vector.extract_strided_slice %2 {offsets = [0, 0], sizes = [16, 8], strides = [1, 1]} : vector<48x8xf32> to vector<16x8xf32>
    %cst_7 = arith.constant dense<0.000000e+00> : vector<8x8xf32>
    %6 = tpu.matmul %3, %5, %cst_7 {dimension_numbers = #tpu.dot_dimension_numbers<[1], [0], [0], [1], [0, 0, 1, 1], [], []>} : vector<8x16xf32>, vector<16x8xf32>, vector<8x8xf32> -> vector<8x8xf32>
    %7 = arith.mulf %6, %4 : vector<8x8xf32>
    %c0_8 = arith.constant 0 : index
    %c0_9 = arith.constant 0 : index
    %c0_10 = arith.constant 0 : index
    %8 = vector.load %arg5[%c0_8, %c0_9, %c0_10] : memref<3x8x8xf32, #tpu.memory_space<vmem>>, vector<1x8x8xf32>
    %9 = vector.shape_cast %8 : vector<1x8x8xf32> to vector<8x8xf32>
    %10 = vector.shape_cast %7 : vector<8x8xf32> to vector<1x8x8xf32>
    tpu.vector_store %arg5[%c0_8, %c0_9, %c0_10], %10 {strides = array<i32>} : memref<3x8x8xf32, #tpu.memory_space<vmem>>, vector<1x8x8xf32>,
    %11 = vector.extract_strided_slice %2 {offsets = [16, 0], sizes = [16, 8], strides = [1, 1]} : vector<48x8xf32> to vector<16x8xf32>
    %cst_11 = arith.constant dense<0.000000e+00> : vector<8x8xf32>
    %12 = tpu.matmul %3, %11, %cst_11 {dimension_numbers = #tpu.dot_dimension_numbers<[1], [0], [0], [1], [0, 0, 1, 1], [], []>} : vector<8x16xf32>, vector<16x8xf32>, vector<8x8xf32> -> vector<8x8xf32>
    %13 = arith.mulf %12, %4 : vector<8x8xf32>
    %c1 = arith.constant 1 : index
    %c0_12 = arith.constant 0 : index
    %c0_13 = arith.constant 0 : index
    %14 = vector.load %arg5[%c1, %c0_12, %c0_13] : memref<3x8x8xf32, #tpu.memory_space<vmem>>, vector<1x8x8xf32>
    %15 = vector.shape_cast %14 : vector<1x8x8xf32> to vector<8x8xf32>
    %16 = vector.shape_cast %13 : vector<8x8xf32> to vector<1x8x8xf32>
    tpu.vector_store %arg5[%c1, %c0_12, %c0_13], %16 {strides = array<i32>} : memref<3x8x8xf32, #tpu.memory_space<vmem>>, vector<1x8x8xf32>,
    %17 = vector.extract_strided_slice %2 {offsets = [32, 0], sizes = [16, 8], strides = [1, 1]} : vector<48x8xf32> to vector<16x8xf32>
    %cst_14 = arith.constant dense<0.000000e+00> : vector<8x8xf32>
    %18 = tpu.matmul %3, %17, %cst_14 {dimension_numbers = #tpu.dot_dimension_numbers<[1], [0], [0], [1], [0, 0, 1, 1], [], []>} : vector<8x16xf32>, vector<16x8xf32>, vector<8x8xf32> -> vector<8x8xf32>
    %19 = arith.mulf %18, %4 : vector<8x8xf32>
    %c2 = arith.constant 2 : index
    %c0_15 = arith.constant 0 : index
    %c0_16 = arith.constant 0 : index
    %20 = vector.load %arg5[%c2, %c0_15, %c0_16] : memref<3x8x8xf32, #tpu.memory_space<vmem>>, vector<1x8x8xf32>
    %21 = vector.shape_cast %20 : vector<1x8x8xf32> to vector<8x8xf32>
    %22 = vector.shape_cast %19 : vector<8x8xf32> to vector<1x8x8xf32>
    tpu.vector_store %arg5[%c2, %c0_15, %c0_16], %22 {strides = array<i32>} : memref<3x8x8xf32, #tpu.memory_space<vmem>>, vector<1x8x8xf32>,
    return
  }
  func.func @transform_0(%arg0: i32) -> (i32, i32) {
    %c0_i32 = arith.constant 0 : i32
    %c0_i32_0 = arith.constant 0 : i32
    return %arg0, %c0_i32 : i32, i32
  }
  func.func @transform_1(%arg0: i32) -> (i32, i32) {
    %c0_i32 = arith.constant 0 : i32
    %c0_i32_0 = arith.constant 0 : i32
    %c0_i32_1 = arith.constant 0 : i32
    return %c0_i32, %c0_i32_0 : i32, i32
  }
  func.func @transform_2(%arg0: i32) -> (i32, i32) {
    %c0_i32 = arith.constant 0 : i32
    %c0_i32_0 = arith.constant 0 : i32
    %c0_i32_1 = arith.constant 0 : i32
    return %c0_i32, %c0_i32_0 : i32, i32
  }
  func.func @transform_3(%arg0: i32) -> (i32, i32) {
    %c0_i32 = arith.constant 0 : i32
    %c0_i32_0 = arith.constant 0 : i32
    %c0_i32_1 = arith.constant 0 : i32
    return %c0_i32, %c0_i32_0 : i32, i32
  }
  func.func @transform_4(%arg0: i32) -> (i32, i32, i32) {
    %c0_i32 = arith.constant 0 : i32
    %c0_i32_0 = arith.constant 0 : i32
    %c0_i32_1 = arith.constant 0 : i32
    return %arg0, %c0_i32, %c0_i32_0 : i32, i32, i32
  }
}

</mosaic_0001>

<llo_original>
// kernel: tpu_custom_call.1
$region0: #{tpu_custom_call.1}
  #allocation0 [shape = 'u32[]', space=smem, size = 0x4, offset = 0x4, fixed_abs, tag = 'smem constant byte address 0x4 - core index']
  #allocation1 [shape = 'u32[144,128]{1,0:T(1,128)}', space=vmem, size = 0x12000, scoped, tag = 'internal scratch']
  %s0 = inlined_call_operand.vmem [shape: f32[96,16], index: 0, kind: input, shape index: {}]
  %s1 = inlined_call_operand.vmem [shape: f32[16,8], index: 1, kind: input, shape index: {}]
  %s2 = inlined_call_operand.vmem [shape: f32[8,16], index: 2, kind: input, shape index: {}]
  %s3 = inlined_call_operand.vmem [shape: f32[8,8], index: 3, kind: input, shape index: {}]
  %s4 = inlined_call_operand.hbm [shape: f32[6,8,8], index: 4, kind: output, shape index: {}]
  %s5 = sld [smem:[#allocation0]]
  $region49: #{tpu_custom_call.1} parent=0
    _
  %s7 = ssub.s32 1, %s5
  %s8 = scalar_select 0, %s7, %s5
  $region1: #{tpu_custom_call.1} parent=0
    #allocation2 [shape = 'u8[24576]{0}', space=vmem, size = 0x6000, scoped, tag = 'output window, operand 0']
    #allocation3 [shape = 's32[2]{0}', space=sflag, size = 0x8, scoped, tag = 'scoped memory for tpu_custom_call.1']
    %9 = vsyncpa [#allocation3], 0
    %s10 = scalar_lea.sflag [#allocation3], 1
    %11 = vsyncpa %s10, 0
    loop: start=0, step=1, limit=4
    $region2: #{tpu_custom_call.1} parent=1 // loop_pre_header
      _
    $region3: #{tpu_custom_call.1} parent=1 // loop_header
      %s13 = sphi 0, %s17
      %p14 = scmp.ge.s32.totalorder %s13, 4
      %s23 = sphi 0, %s25
      %s26 = sphi 0, %s23
      %s27 = sphi 0, %s26
      %s43 = sphi 0, %s27
      %s47 = sphi 0, %s47
      %s49 = sphi 0, %s47
      %s50 = sphi 0, %s49
      %s64 = sphi 0, %s50
      %s68 = sphi 0, %s68
      %s70 = sphi 0, %s68
      %s71 = sphi 0, %s70
      %s85 = sphi 0, %s71
      %s89 = sphi 0, %s89
      %s91 = sphi 0, %s89
      %s92 = sphi 0, %s91
      %s106 = sphi 0, %s92
      %s112 = sphi 0, %s114
      %s115 = sphi 0, %s112
      %s116 = sphi 0, %s115
      %s132 = sphi 0, %s116
    $region4: #{tpu_custom_call.1} parent=1 // loop_header_branch
      %16 = sbr.rel (%p14) target = $region8
    $region5: #{tpu_custom_call.1} parent=1 // loop_body
      %s18 = ssub.s32 %s13, 1
      %s19 = ssub.s32 %s13, 2
      %s20 = sadd.s32 %s13, 1
      %s21 = ssub.s32 %s13, %s20
      %p22 = scmp.eq.s32.totalorder %s21, 0
      %s24 = sadd.s32 %s23, 1
      %s25 = scalar_select %p22, %s23, %s24
      %p28 = pneg %p22
      %p29 = scmp.eq.s32.totalorder %s13, 1
      %p30 = por %p28, %p29
      %p31 = scmp.ne.s32.totalorder %s23, %s26
      %p32 = scmp.eq.s32.totalorder %s13, 0
      %p33 = por %p31, %p32
      %p34 = scmp.ne.s32.totalorder %s23, %s26
      %p35 = scmp.eq.s32.totalorder %s18, 1
      %p36 = por %p34, %p35
      %p37 = scmp.ne.s32.totalorder %s26, %s27
      %p38 = scmp.eq.s32.totalorder %s18, 0
      %p39 = por %p37, %p38
      %p40 = scmp.ne.s32.totalorder %s26, %s27
      %p41 = scmp.eq.s32.totalorder %s19, 1
      %p42 = por %p40, %p41
      %p44 = scmp.ne.s32.totalorder %s27, %s43
      %p45 = scmp.eq.s32.totalorder %s19, 0
      %p46 = por %p44, %p45
      %s48 = sadd.s32 %s47, 1
      %p51 = scmp.eq.s32.totalorder %s13, 1
      %p52 = scmp.ne.s32.totalorder %s47, %s49
      %p53 = scmp.eq.s32.totalorder %s13, 0
      %p54 = por %p52, %p53
      %p55 = scmp.ne.s32.totalorder %s47, %s49
      %p56 = scmp.eq.s32.totalorder %s18, 1
      %p57 = por %p55, %p56
      %p58 = scmp.ne.s32.totalorder %s49, %s50
      %p59 = scmp.eq.s32.totalorder %s18, 0
      %p60 = por %p58, %p59
      %p61 = scmp.ne.s32.totalorder %s49, %s50
      %p62 = scmp.eq.s32.totalorder %s19, 1
      %p63 = por %p61, %p62
      %p65 = scmp.ne.s32.totalorder %s50, %s64
      %p66 = scmp.eq.s32.totalorder %s19, 0
      %p67 = por %p65, %p66
      %s69 = sadd.s32 %s68, 1
      %p72 = scmp.eq.s32.totalorder %s13, 1
      %p73 = scmp.ne.s32.totalorder %s68, %s70
      %p74 = scmp.eq.s32.totalorder %s13, 0
      %p75 = por %p73, %p74
      %p76 = scmp.ne.s32.totalorder %s68, %s70
      %p77 = scmp.eq.s32.totalorder %s18, 1
      %p78 = por %p76, %p77
      %p79 = scmp.ne.s32.totalorder %s70, %s71
      %p80 = scmp.eq.s32.totalorder %s18, 0
      %p81 = por %p79, %p80
      %p82 = scmp.ne.s32.totalorder %s70, %s71
      %p83 = scmp.eq.s32.totalorder %s19, 1
      %p84 = por %p82, %p83
      %p86 = scmp.ne.s32.totalorder %s71, %s85
      %p87 = scmp.eq.s32.totalorder %s19, 0
      %p88 = por %p86, %p87
      %s90 = sadd.s32 %s89, 1
      %p93 = scmp.eq.s32.totalorder %s13, 1
      %p94 = scmp.ne.s32.totalorder %s89, %s91
      %p95 = scmp.eq.s32.totalorder %s13, 0
      %p96 = por %p94, %p95
      %p97 = scmp.ne.s32.totalorder %s89, %s91
      %p98 = scmp.eq.s32.totalorder %s18, 1
      %p99 = por %p97, %p98
      %p100 = scmp.ne.s32.totalorder %s91, %s92
      %p101 = scmp.eq.s32.totalorder %s18, 0
      %p102 = por %p100, %p101
      %p103 = scmp.ne.s32.totalorder %s91, %s92
      %p104 = scmp.eq.s32.totalorder %s19, 1
      %p105 = por %p103, %p104
      %p107 = scmp.ne.s32.totalorder %s92, %s106
      %p108 = scmp.eq.s32.totalorder %s19, 0
      %p109 = por %p107, %p108
      %s110 = ssub.s32 %s13, %s20
      %p111 = scmp.eq.s32.totalorder %s110, 0
      %s113 = sadd.s32 %s112, 1
      %s114 = scalar_select %p111, %s112, %s113
      %p117 = pneg %p111
      %p118 = scmp.eq.s32.totalorder %s13, 1
      %p119 = por %p117, %p118
      %p120 = scmp.ne.s32.totalorder %s112, %s115
      %p121 = scmp.eq.s32.totalorder %s13, 0
      %p122 = por %p120, %p121
      %p123 = scmp.ne.s32.totalorder %s112, %s115
      %p124 = scmp.eq.s32.totalorder %s18, 1
      %p125 = por %p123, %p124
      %p126 = scmp.ne.s32.totalorder %s115, %s116
      %p127 = scmp.eq.s32.totalorder %s18, 0
      %p128 = por %p126, %p127
      %p129 = scmp.ne.s32.totalorder %s115, %s116
      %p130 = scmp.eq.s32.totalorder %s19, 1
      %p131 = por %p129, %p130
      %p133 = scmp.ne.s32.totalorder %s116, %s132
      %p134 = scmp.eq.s32.totalorder %s19, 0
      %p135 = por %p133, %p134
      %p136 = scmp.le.s32.totalorder 1, %s13
      %p137 = scmp.lt.s32.totalorder %s13, 3
      %p138 = pnand %p136, %p137
      %p139 = pneg %p138
      // Predicated region
      $region9: #{tpu_custom_call.1} parent=5 // pred_check
        _
      $region10: #{tpu_custom_call.1} parent=5 // pred_check_branch
        %141 = sbr.rel (%p138) target = $region12
      $region11: #{tpu_custom_call.1} parent=5 // pred_region
        %s142 = ssub.s32 %s13, 1
        // Predicated region
        $region13: #{tpu_custom_call.1} parent=11 // pred_check
          %p143 = pneg %p60
        $region14: #{tpu_custom_call.1} parent=11 // pred_check_branch
          %145 = sbr.rel (%p143) target = $region16
        $region15: #{tpu_custom_call.1} parent=11 // pred_region
          _
        $region16: #{tpu_custom_call.1} parent=11 // pred_fallthru
          _
        // Predicated region
        $region17: #{tpu_custom_call.1} parent=11 // pred_check
          %p146 = pneg %p81
        $region18: #{tpu_custom_call.1} parent=11 // pred_check_branch
          %148 = sbr.rel (%p146) target = $region20
        $region19: #{tpu_custom_call.1} parent=11 // pred_region
          _
        $region20: #{tpu_custom_call.1} parent=11 // pred_fallthru
          _
        // Predicated region
        $region21: #{tpu_custom_call.1} parent=11 // pred_check
          %p149 = pneg %p102
        $region22: #{tpu_custom_call.1} parent=11 // pred_check_branch
          %151 = sbr.rel (%p149) target = $region24
        $region23: #{tpu_custom_call.1} parent=11 // pred_region
          _
        $region24: #{tpu_custom_call.1} parent=11 // pred_fallthru
          _
      $region12: #{tpu_custom_call.1} parent=5 // pred_fallthru
        _
      %p152 = scmp.lt.s32.totalorder %s13, 2
      // Predicated region
      $region25: #{tpu_custom_call.1} parent=5 // pred_check
        %p153 = pneg %p152
      $region26: #{tpu_custom_call.1} parent=5 // pred_check_branch
        %155 = sbr.rel (%p153) target = $region28
      $region27: #{tpu_custom_call.1} parent=5 // pred_region
        // Predicated region
        $region29: #{tpu_custom_call.1} parent=27 // pred_check
          %p156 = pneg %p33
        $region30: #{tpu_custom_call.1} parent=27 // pred_check_branch
          %158 = sbr.rel (%p156) target = $region32
        $region31: #{tpu_custom_call.1} parent=27 // pred_region
          %s159 = smul.u32 6, %s13
          %p160 = scmp.lt.s32.totalorder %s159, 11
          %s161 = scalar_select %p160, %s159, 11
          %s162 = smul.addr %s161, 8
          %s163 = scalar_lea.vmem %s0, %s162
          %s164 = smul.u32 6, %s13
        $region32: #{tpu_custom_call.1} parent=27 // pred_fallthru
          _
      $region28: #{tpu_custom_call.1} parent=5 // pred_fallthru
        _
      %p165 = scmp.le.s32.totalorder 1, %s13
      %p166 = scmp.lt.s32.totalorder %s13, 3
      %p167 = pnand %p165, %p166
      %p168 = pneg %p167
      // Predicated region
      $region33: #{tpu_custom_call.1} parent=5 // pred_check
        _
      $region34: #{tpu_custom_call.1} parent=5 // pred_check_branch
        %170 = sbr.rel (%p167) target = $region36
      $region35: #{tpu_custom_call.1} parent=5 // pred_region
        %s171 = ssub.s32 %s13, 1
        %s172 = smul.u32 6, %s18
        %p173 = scmp.lt.s32.totalorder %s172, 11
        %s174 = scalar_select %p173, %s172, 11
        %s175 = smul.addr %s174, 8
        %s176 = scalar_lea.vmem %s0, %s175
        %p177 = pneg %p39
        %p178 = pneg %p36
        %p179 = pneg %p60
        %p180 = pneg %p57
        %p181 = pneg %p81
        %p182 = pneg %p78
        %p183 = pneg %p102
        %p184 = pneg %p99
        %p185 = pneg %p128
        %p186 = pneg %p125
        %s187 = sand.u32 %s115, 1
        %s188 = scalar_lea.sflag [#allocation3], %s187
        %s189 = sand.u32 %s115, 1
        %s190 = smul.addr %s189, 24
        %s191 = scalar_lea.vmem [#allocation2], %s190
        %s192 = smul.u32 6, %s18
        %p193 = scmp.lt.s32.totalorder %s192, 11
        %s194 = scalar_select %p193, %s192, 11
        %s195 = smul.addr %s194, 8
        %s196 = scalar_lea.vmem %s0, %s195
        %s197 = smul.u32 6, %s18
        %s198 = smul.u32 3, %s18
        %v199 = vld [vmem:[%s196] sm:$0xff]
        %v200 = vld [vmem:[%s196 + $0x8] sm:$0xff]
        %v201 = vld [vmem:[%s196 + $0x10] sm:$0xff]
        %v202 = vld [vmem:[%s196 + $0x18] sm:$0xff]
        %v203 = vld [vmem:[%s196 + $0x20] sm:$0xff]
        %v204 = vld [vmem:[%s196 + $0x28] sm:$0xff]
        %v205 = vld [vmem:[%s1] sm:$0xff]
        %v206 = vld [vmem:[%s1 + $0x8] sm:$0xff]
        %vm207 = vcmask 130048
        %v209 = vsel %vm207, %v199, 0
        %v212 = vsel %vm207, %v200, 0
        %v215 = vsel %vm207, %v201, 0
        %v218 = vsel %vm207, %v202, 0
        %v221 = vsel %vm207, %v203, 0
        %v224 = vsel %vm207, %v204, 0
        %226 = vmatprep.subr.mxu0 0.0
        %227 = vmatpush1.msra.mxu0 %v205
        %228 = vmatprep.subr.mxu0 0.0
        %229 = vmatpush1.msra.mxu0 %v206
        %230 = vmatprep.subr.mxu0 0.0
        %231 = vmatpush1.msra.mxu0 0.0
        %232 = vmatprep.subr.mxu0 0.0
        %233 = vmatpush1.msra.mxu0 0.0
        %234 = vmatprep.subr.mxu0 0.0
        %235 = vmatpush1.msra.mxu0 0.0
        %236 = vmatprep.subr.mxu0 0.0
        %237 = vmatpush1.msra.mxu0 0.0
        %238 = vmatprep.subr.mxu0 0.0
        %239 = vmatpush1.msra.mxu0 0.0
        %240 = vmatprep.subr.mxu0 0.0
        %241 = vmatpush1.msra.mxu0 0.0
        %242 = vmatprep.subr.mxu0 0.0
        %243 = vmatpush1.msra.mxu0 0.0
        %244 = vmatprep.subr.mxu0 0.0
        %245 = vmatpush1.msra.mxu0 0.0
        %246 = vmatprep.subr.mxu0 0.0
        %247 = vmatpush1.msra.mxu0 0.0
        %248 = vmatprep.subr.mxu0 0.0
        %249 = vmatpush1.msra.mxu0 0.0
        %250 = vmatprep.subr.mxu0 0.0
        %251 = vmatpush1.msra.mxu0 0.0
        %252 = vmatprep.subr.mxu0 0.0
        %253 = vmatpush1.msra.mxu0 0.0
        %254 = vmatprep.subr.mxu0 0.0
        %255 = vmatpush1.msra.mxu0 0.0
        %256 = vmatprep.subr.mxu0 0.0
        %257 = vmatpush1.msra.mxu0 0.0
        %258 = vmatprep.subr.mxu0 0.0
        %259 = vmatpush1.msra.mxu0 0.0
        %260 = vmatprep.subr.mxu0 0.0
        %261 = vmatpush1.msra.mxu0 0.0
        %262 = vmatprep.subr.mxu0 0.0
        %263 = vmatpush1.msra.mxu0 0.0
        %264 = vmatprep.subr.mxu0 0.0
        %265 = vmatpush1.msra.mxu0 0.0
        %266 = vmatprep.subr.mxu0 0.0
        %267 = vmatpush1.msra.mxu0 0.0
        %268 = vmatprep.subr.mxu0 0.0
        %269 = vmatpush1.msra.mxu0 0.0
        %270 = vmatprep.subr.mxu0 0.0
        %271 = vmatpush1.msra.mxu0 0.0
        %272 = vmatprep.subr.mxu0 0.0
        %273 = vmatpush1.msra.mxu0 0.0
        %274 = vmatprep.subr.mxu0 0.0
        %275 = vmatpush1.msra.mxu0 0.0
        %276 = vmatprep.subr.mxu0 0.0
        %277 = vmatpush1.msra.mxu0 0.0
        %278 = vmatprep.subr.mxu0 0.0
        %279 = vmatpush1.msra.mxu0 0.0
        %280 = vmatprep.subr.mxu0 0.0
        %281 = vmatpush1.msra.mxu0 0.0
        %282 = vmatprep.subr.mxu0 0.0
        %283 = vmatpush1.msra.mxu0 0.0
        %284 = vmatprep.subr.mxu0 0.0
        %285 = vmatpush1.msra.mxu0 0.0
        %286 = vmatprep.subr.mxu0 0.0
        %287 = vmatpush1.msra.mxu0 0.0
        %288 = vmatprep.subr.mxu0 0.0
        %289 = vmatpush1.msra.mxu0 0.0
        %290 = vmatprep.mubr.f32.mxu0 0.0
        %291 = vmatmul.mubr.f32.gmra.mrb[0].mxu0 %v209
        %v292 = vpop.f32.mrb[0].mxu0
        %v293 = vadd.f32 0.0, %v292
        %v294 = vpop.f32.mrb[0].mxu0
        %295 = vmatprep.mubr.f32.mxu0 0.0
        %296 = vmatmul.mubr.f32.gmra.mrb[0].mxu0 %v212
        %v297 = vpop.f32.mrb[0].mxu0
        %v298 = vadd.f32 0.0, %v297
        %v299 = vpop.f32.mrb[0].mxu0
        %300 = vmatprep.mubr.f32.mxu0 0.0
        %301 = vmatmul.mubr.f32.gmra.mrb[0].mxu0 %v215
        %v302 = vpop.f32.mrb[0].mxu0
        %v303 = vadd.f32 0.0, %v302
        %v304 = vpop.f32.mrb[0].mxu0
        %305 = vmatprep.mubr.f32.mxu0 0.0
        %306 = vmatmul.mubr.f32.gmra.mrb[0].mxu0 %v218
        %v307 = vpop.f32.mrb[0].mxu0
        %v308 = vadd.f32 0.0, %v307
        %v309 = vpop.f32.mrb[0].mxu0
        %310 = vmatprep.mubr.f32.mxu0 0.0
        %311 = vmatmul.mubr.f32.gmra.mrb[0].mxu0 %v221
        %v312 = vpop.f32.mrb[0].mxu0
        %v313 = vadd.f32 0.0, %v312
        %v314 = vpop.f32.mrb[0].mxu0
        %315 = vmatprep.mubr.f32.mxu0 0.0
        %316 = vmatmul.mubr.f32.gmra.mrb[0].mxu0 %v224
        %v317 = vpop.f32.mrb[0].mxu0
        %v318 = vadd.f32 0.0, %v317
        %v319 = vpop.f32.mrb[0].mxu0
        %320 = vdwg.mxu0
        %v321 = vld [vmem:[%s2] sm:$0xff]
        %v322 = vld [vmem:[%s3] sm:$0xff]
        %v324 = vsel %vm207, %v321, 0
        %326 = vmatprep.subr.mxu0 0.0
        %327 = vmatpush1.msra.mxu0 %v293
        %328 = vmatprep.subr.mxu0 0.0
        %329 = vmatpush1.msra.mxu0 %v298
        %330 = vmatprep.subr.mxu0 0.0
        %331 = vmatpush1.msra.mxu0 0.0
        %332 = vmatprep.subr.mxu0 0.0
        %333 = vmatpush1.msra.mxu0 0.0
        %334 = vmatprep.subr.mxu0 0.0
        %335 = vmatpush1.msra.mxu0 0.0
        %336 = vmatprep.subr.mxu0 0.0
        %337 = vmatpush1.msra.mxu0 0.0
        %338 = vmatprep.subr.mxu0 0.0
        %339 = vmatpush1.msra.mxu0 0.0
        %340 = vmatprep.subr.mxu0 0.0
        %341 = vmatpush1.msra.mxu0 0.0
        %342 = vmatprep.subr.mxu0 0.0
        %343 = vmatpush1.msra.mxu0 0.0
        %344 = vmatprep.subr.mxu0 0.0
        %345 = vmatpush1.msra.mxu0 0.0
        %346 = vmatprep.subr.mxu0 0.0
        %347 = vmatpush1.msra.mxu0 0.0
        %348 = vmatprep.subr.mxu0 0.0
        %349 = vmatpush1.msra.mxu0 0.0
        %350 = vmatprep.subr.mxu0 0.0
        %351 = vmatpush1.msra.mxu0 0.0
        %352 = vmatprep.subr.mxu0 0.0
        %353 = vmatpush1.msra.mxu0 0.0
        %354 = vmatprep.subr.mxu0 0.0
        %355 = vmatpush1.msra.mxu0 0.0
        %356 = vmatprep.subr.mxu0 0.0
        %357 = vmatpush1.msra.mxu0 0.0
        %358 = vmatprep.subr.mxu0 0.0
        %359 = vmatpush1.msra.mxu0 0.0
        %360 = vmatprep.subr.mxu0 0.0
        %361 = vmatpush1.msra.mxu0 0.0
        %362 = vmatprep.subr.mxu0 0.0
        %363 = vmatpush1.msra.mxu0 0.0
        %364 = vmatprep.subr.mxu0 0.0
        %365 = vmatpush1.msra.mxu0 0.0
        %366 = vmatprep.subr.mxu0 0.0
        %367 = vmatpush1.msra.mxu0 0.0
        %368 = vmatprep.subr.mxu0 0.0
        %369 = vmatpush1.msra.mxu0 0.0
        %370 = vmatprep.subr.mxu0 0.0
        %371 = vmatpush1.msra.mxu0 0.0
        %372 = vmatprep.subr.mxu0 0.0
        %373 = vmatpush1.msra.mxu0 0.0
        %374 = vmatprep.subr.mxu0 0.0
        %375 = vmatpush1.msra.mxu0 0.0
        %376 = vmatprep.subr.mxu0 0.0
        %377 = vmatpush1.msra.mxu0 0.0
        %378 = vmatprep.subr.mxu0 0.0
        %379 = vmatpush1.msra.mxu0 0.0
        %380 = vmatprep.subr.mxu0 0.0
        %381 = vmatpush1.msra.mxu0 0.0
        %382 = vmatprep.subr.mxu0 0.0
        %383 = vmatpush1.msra.mxu0 0.0
        %384 = vmatprep.subr.mxu0 0.0
        %385 = vmatpush1.msra.mxu0 0.0
        %386 = vmatprep.subr.mxu0 0.0
        %387 = vmatpush1.msra.mxu0 0.0
        %388 = vmatprep.subr.mxu0 0.0
        %389 = vmatpush1.msra.mxu0 0.0
        %390 = vmatprep.mubr.f32.mxu0 0.0
        %391 = vmatmul.mubr.f32.gmra.mrb[0].mxu0 %v324
        %v392 = vpop.f32.mrb[0].mxu0
        %v393 = vadd.f32 0.0, %v392
        %v394 = vpop.f32.mrb[0].mxu0
        %395 = vdwg.mxu0
        %v396 = vmul.f32 %v393, %v322
        %vm397 = vcmask 64512
        %398 = vst.msk [vmem:[%s191] sm:$0xff] %vm397, %v396
        %399 = vmatprep.subr.mxu0 0.0
        %400 = vmatpush1.msra.mxu0 %v303
        %401 = vmatprep.subr.mxu0 0.0
        %402 = vmatpush1.msra.mxu0 %v308
        %403 = vmatprep.subr.mxu0 0.0
        %404 = vmatpush1.msra.mxu0 0.0
        %405 = vmatprep.subr.mxu0 0.0
        %406 = vmatpush1.msra.mxu0 0.0
        %407 = vmatprep.subr.mxu0 0.0
        %408 = vmatpush1.msra.mxu0 0.0
        %409 = vmatprep.subr.mxu0 0.0
        %410 = vmatpush1.msra.mxu0 0.0
        %411 = vmatprep.subr.mxu0 0.0
        %412 = vmatpush1.msra.mxu0 0.0
        %413 = vmatprep.subr.mxu0 0.0
        %414 = vmatpush1.msra.mxu0 0.0
        %415 = vmatprep.subr.mxu0 0.0
        %416 = vmatpush1.msra.mxu0 0.0
        %417 = vmatprep.subr.mxu0 0.0
        %418 = vmatpush1.msra.mxu0 0.0
        %419 = vmatprep.subr.mxu0 0.0
        %420 = vmatpush1.msra.mxu0 0.0
        %421 = vmatprep.subr.mxu0 0.0
        %422 = vmatpush1.msra.mxu0 0.0
        %423 = vmatprep.subr.mxu0 0.0
        %424 = vmatpush1.msra.mxu0 0.0
        %425 = vmatprep.subr.mxu0 0.0
        %426 = vmatpush1.msra.mxu0 0.0
        %427 = vmatprep.subr.mxu0 0.0
        %428 = vmatpush1.msra.mxu0 0.0
        %429 = vmatprep.subr.mxu0 0.0
        %430 = vmatpush1.msra.mxu0 0.0
        %431 = vmatprep.subr.mxu0 0.0
        %432 = vmatpush1.msra.mxu0 0.0
        %433 = vmatprep.subr.mxu0 0.0
        %434 = vmatpush1.msra.mxu0 0.0
        %435 = vmatprep.subr.mxu0 0.0
        %436 = vmatpush1.msra.mxu0 0.0
        %437 = vmatprep.subr.mxu0 0.0
        %438 = vmatpush1.msra.mxu0 0.0
        %439 = vmatprep.subr.mxu0 0.0
        %440 = vmatpush1.msra.mxu0 0.0
        %441 = vmatprep.subr.mxu0 0.0
        %442 = vmatpush1.msra.mxu0 0.0
        %443 = vmatprep.subr.mxu0 0.0
        %444 = vmatpush1.msra.mxu0 0.0
        %445 = vmatprep.subr.mxu0 0.0
        %446 = vmatpush1.msra.mxu0 0.0
        %447 = vmatprep.subr.mxu0 0.0
        %448 = vmatpush1.msra.mxu0 0.0
        %449 = vmatprep.subr.mxu0 0.0
        %450 = vmatpush1.msra.mxu0 0.0
        %451 = vmatprep.subr.mxu0 0.0
        %452 = vmatpush1.msra.mxu0 0.0
        %453 = vmatprep.subr.mxu0 0.0
        %454 = vmatpush1.msra.mxu0 0.0
        %455 = vmatprep.subr.mxu0 0.0
        %456 = vmatpush1.msra.mxu0 0.0
        %457 = vmatprep.subr.mxu0 0.0
        %458 = vmatpush1.msra.mxu0 0.0
        %459 = vmatprep.subr.mxu0 0.0
        %460 = vmatpush1.msra.mxu0 0.0
        %461 = vmatprep.subr.mxu0 0.0
        %462 = vmatpush1.msra.mxu0 0.0
        %463 = vmatprep.mubr.f32.mxu0 0.0
        %464 = vmatmul.mubr.f32.gmra.mrb[0].mxu0 %v324
        %v465 = vpop.f32.mrb[0].mxu0
        %v466 = vadd.f32 0.0, %v465
        %v467 = vpop.f32.mrb[0].mxu0
        %468 = vdwg.mxu0
        %v469 = vmul.f32 %v466, %v322
        %s470 = scalar_lea.vmem %s191, 8 [#allocation2]
        %471 = vst.msk [vmem:[%s470] sm:$0xff] %vm397, %v469
        %472 = vmatprep.subr.mxu0 0.0
        %473 = vmatpush1.msra.mxu0 %v313
        %474 = vmatprep.subr.mxu0 0.0
        %475 = vmatpush1.msra.mxu0 %v318
        %476 = vmatprep.subr.mxu0 0.0
        %477 = vmatpush1.msra.mxu0 0.0
        %478 = vmatprep.subr.mxu0 0.0
        %479 = vmatpush1.msra.mxu0 0.0
        %480 = vmatprep.subr.mxu0 0.0
        %481 = vmatpush1.msra.mxu0 0.0
        %482 = vmatprep.subr.mxu0 0.0
        %483 = vmatpush1.msra.mxu0 0.0
        %484 = vmatprep.subr.mxu0 0.0
        %485 = vmatpush1.msra.mxu0 0.0
        %486 = vmatprep.subr.mxu0 0.0
        %487 = vmatpush1.msra.mxu0 0.0
        %488 = vmatprep.subr.mxu0 0.0
        %489 = vmatpush1.msra.mxu0 0.0
        %490 = vmatprep.subr.mxu0 0.0
        %491 = vmatpush1.msra.mxu0 0.0
        %492 = vmatprep.subr.mxu0 0.0
        %493 = vmatpush1.msra.mxu0 0.0
        %494 = vmatprep.subr.mxu0 0.0
        %495 = vmatpush1.msra.mxu0 0.0
        %496 = vmatprep.subr.mxu0 0.0
        %497 = vmatpush1.msra.mxu0 0.0
        %498 = vmatprep.subr.mxu0 0.0
        %499 = vmatpush1.msra.mxu0 0.0
        %500 = vmatprep.subr.mxu0 0.0
        %501 = vmatpush1.msra.mxu0 0.0
        %502 = vmatprep.subr.mxu0 0.0
        %503 = vmatpush1.msra.mxu0 0.0
        %504 = vmatprep.subr.mxu0 0.0
        %505 = vmatpush1.msra.mxu0 0.0
        %506 = vmatprep.subr.mxu0 0.0
        %507 = vmatpush1.msra.mxu0 0.0
        %508 = vmatprep.subr.mxu0 0.0
        %509 = vmatpush1.msra.mxu0 0.0
        %510 = vmatprep.subr.mxu0 0.0
        %511 = vmatpush1.msra.mxu0 0.0
        %512 = vmatprep.subr.mxu0 0.0
        %513 = vmatpush1.msra.mxu0 0.0
        %514 = vmatprep.subr.mxu0 0.0
        %515 = vmatpush1.msra.mxu0 0.0
        %516 = vmatprep.subr.mxu0 0.0
        %517 = vmatpush1.msra.mxu0 0.0
        %518 = vmatprep.subr.mxu0 0.0
        %519 = vmatpush1.msra.mxu0 0.0
        %520 = vmatprep.subr.mxu0 0.0
        %521 = vmatpush1.msra.mxu0 0.0
        %522 = vmatprep.subr.mxu0 0.0
        %523 = vmatpush1.msra.mxu0 0.0
        %524 = vmatprep.subr.mxu0 0.0
        %525 = vmatpush1.msra.mxu0 0.0
        %526 = vmatprep.subr.mxu0 0.0
        %527 = vmatpush1.msra.mxu0 0.0
        %528 = vmatprep.subr.mxu0 0.0
        %529 = vmatpush1.msra.mxu0 0.0
        %530 = vmatprep.subr.mxu0 0.0
        %531 = vmatpush1.msra.mxu0 0.0
        %532 = vmatprep.subr.mxu0 0.0
        %533 = vmatpush1.msra.mxu0 0.0
        %534 = vmatprep.subr.mxu0 0.0
        %535 = vmatpush1.msra.mxu0 0.0
        %536 = vmatprep.mubr.f32.mxu0 0.0
        %537 = vmatmul.mubr.f32.gmra.mrb[0].mxu0 %v324
        %v538 = vpop.f32.mrb[0].mxu0
        %v539 = vadd.f32 0.0, %v538
        %v540 = vpop.f32.mrb[0].mxu0
        %541 = vdwg.mxu0
        %v542 = vmul.f32 %v539, %v322
        %s543 = scalar_lea.vmem %s191, 16 [#allocation2]
        %544 = vst.msk [vmem:[%s543] sm:$0xff] %vm397, %v542
        %s545 = sand.u32 %s115, 1
        %s546 = scalar_lea.sflag [#allocation3], %s545
        %s547 = sand.u32 %s115, 1
        %s548 = smul.addr %s547, 24
        %s549 = scalar_lea.vmem [#allocation2], %s548
        // Predicated region
        $region37: #{tpu_custom_call.1} parent=35 // pred_check
          %p550 = pneg %p125
        $region38: #{tpu_custom_call.1} parent=35 // pred_check_branch
          %552 = sbr.rel (%p550) target = $region40
        $region39: #{tpu_custom_call.1} parent=35 // pred_region
          %s553 = smul.u32 3, %s18
          %s555 = ssub.s32 384, 384
          %556 = vsyncadd %s546, %s555
          %s557 = smul.addr %s553, 128
          %s558 = scalar_lea.hbm %s4, %s557
          %s559 = sshll.u32 %s549, 4
          %s560 = int_to_ptr.vmem [resolvable:$true] %s559
          %565 = dma.vmem_to_hbm [thread:$0]  %s560, 384, %s558, %s546, 128, 128, 8
        $region40: #{tpu_custom_call.1} parent=35 // pred_fallthru
          _
      $region36: #{tpu_custom_call.1} parent=5 // pred_fallthru
        _
      %p566 = scmp.le.s32.totalorder 2, %s13
      // Predicated region
      $region41: #{tpu_custom_call.1} parent=5 // pred_check
        %p567 = pneg %p566
      $region42: #{tpu_custom_call.1} parent=5 // pred_check_branch
        %569 = sbr.rel (%p567) target = $region44
      $region43: #{tpu_custom_call.1} parent=5 // pred_region
        %s570 = ssub.s32 %s13, 2
        // Predicated region
        $region45: #{tpu_custom_call.1} parent=43 // pred_check
          %p571 = pneg %p131
        $region46: #{tpu_custom_call.1} parent=43 // pred_check_branch
          %573 = sbr.rel (%p571) target = $region48
        $region47: #{tpu_custom_call.1} parent=43 // pred_region
          %s574 = sand.u32 %s116, 1
          %s575 = scalar_lea.sflag [#allocation3], %s574
          %s576 = sand.u32 %s116, 1
          %s577 = smul.addr %s576, 24
          %s578 = scalar_lea.vmem [#allocation2], %s577
          %579 = dma.done %s575, 384
        $region48: #{tpu_custom_call.1} parent=43 // pred_fallthru
          _
      $region44: #{tpu_custom_call.1} parent=5 // pred_fallthru
        _
    $region6: #{tpu_custom_call.1} parent=1 // loop_footer
      %s17 = sadd.s32 1, %s13
    $region7: #{tpu_custom_call.1} parent=1 // loop_footer_branch
      %12 = sbr.rel target = $region3
    $region8: #{tpu_custom_call.1} parent=1 // loop_exit
      _
    %580 = vsyncpa [#allocation3], 1
    %s581 = scalar_lea.sflag [#allocation3], 1
    %582 = vsyncpa %s581, 1

</llo_original>
